<compile_context>
chip_gen: v7x
topology: tpu7x:2x2x1
jax: 0.10.0
libtpu: 0.0.40
codegen_flags: <defaults>
</compile_context>

<pallas_src>
import numpy as np
import jax
import jax.numpy as jnp
from jax import lax
from jax.experimental import pallas as pl
from jax.experimental.pallas import tpu as pltpu


# ----------------------------------------------------------------------------
# Python-side constant (pure scalar math, identical to the PyTorch module).
# ----------------------------------------------------------------------------
def _distance_swept_out_by_legs_until_angle(theta):
    ans = 0.0
    gamma1 = -1.51491088379
    gamma2 = -1.02925556679
    epsilon1 = 0.0497377466
    epsilon2 = 0.0253105666
    epsilon3 = 0.0333769208
    if theta < -np.pi / 2 or theta > np.pi / 2:
        return 0
    ans += epsilon1 * min([gamma1, theta])
    if theta < gamma1:
        return ans
    ans += epsilon2 * (min([gamma2, theta]) - gamma1)
    if theta < gamma2:
        return ans
    ans += epsilon3 * (theta - gamma2)
    return ans


def _distance_swept_out_between_angles(theta1, theta2):
    return abs(
        _distance_swept_out_by_legs_until_angle(theta2)
        - _distance_swept_out_by_legs_until_angle(theta1)
    )


MAX_POSSIBLE_DIST = float(
    _distance_swept_out_between_angles(-np.pi / 2, np.pi / 2)
)


# ----------------------------------------------------------------------------
# Pallas kernel: fused MLP on lane-packed input.
#   Each sublane row of x holds PACK (=128//D) consecutive batch rows, so both
#   matmuls are plain NN dot_generals and all DMAs are lane-dense.
# ----------------------------------------------------------------------------
def _mlp_kernel(x_ref, w1_ref, b1_ref, w2_ref, b2_ref, o_ref):
    # x_ref : (TR, 128)       VMEM, bf16 or f32 (PACK batch rows per sublane row)
    # w1_ref: (128, PACK*H)   VMEM, same dtype as x; block-diag(PACK x w1^T)
    # b1_ref: (1, PACK*H)     VMEM f32; b1 tiled PACK times
    # w2_ref: (PACK*H, PACK)  VMEM f32; block-diag(PACK x w2^T)
    # b2_ref: (1,)            SMEM f32
    # o_ref : (TR, PACK)      VMEM f32
    h = lax.dot_general(                       # layer 1 on the MXU, K = 128
        x_ref[...], w1_ref[...],
        dimension_numbers=(((1,), (0,)), ((), ())),
        preferred_element_type=jnp.float32,
    )
    h = jnp.maximum(h + b1_ref[...], 0.0)      # bias broadcast + ReLU (VPU)

    y = lax.dot_general(                       # layer 2 (H -> 1) per packed slot
        h, w2_ref[...],
        dimension_numbers=(((1,), (0,)), ((), ())),
        preferred_element_type=jnp.float32,
    )
    y = y + b2_ref[0]                          # (TR, PACK)

    # Sigmoid: exp on the EUP, approximate reciprocal on the EUP slot, and the
    # physical-distance scale folded into the single final multiply.
    sig = pl.reciprocal(1.0 + jnp.exp(-y), approx=True)
    o_ref[...] = (MAX_POSSIBLE_DIST * sig).astype(o_ref.dtype)


def _round_up(n, m):
    return ((n + m - 1) // m) * m


def neural_network_forward(x, w1, b1, w2, b2, *, tm=16384):
    """Pallas equivalent of NeuralNetwork.forward.

    x : (B, ...)  any trailing dims (flattened like nn.Flatten); D must divide 128
    w1: (H, D) PyTorch layout, b1: (H,)
    w2: (1, H) PyTorch layout, b2: (1,)
    tm: batch rows per grid step (default 16384 ~= 1 MiB of f32 x per step).
    returns (B, 1) float32
    """
    B = x.shape[0]
    x2d = x.reshape(B, -1)                      # Flatten (glue, plain JAX)
    if x2d.dtype not in (jnp.bfloat16, jnp.float32):
        x2d = x2d.astype(jnp.float32)           # keep bf16 as-is (HBM savings)
    D = x2d.shape[1]
    H = w1.shape[0]
    assert 128 % D == 0, "lane-packing path requires the feature dim to divide 128"
    PACK = 128 // D                             # batch rows packed per sublane row

    # --- pack the feature axis into full 128 lanes -------------------------
    # (B, D) -> (Bp, 128) is a free, contiguous reshape when B % PACK == 0.
    # Otherwise pad by < PACK rows (tiny; only copies when B is not a multiple
    # of PACK).  No full-tile padding: the grid's last block is partial.
    Bp = pl.cdiv(B, PACK)
    if Bp * PACK != B:
        x2d = jnp.pad(x2d, ((0, Bp * PACK - B), (0, 0)))
    x_packed = x2d.reshape(Bp, 128)

    # --- packed (block-diagonal) weights, cast to x's dtype for the MXU ----
    f32 = jnp.float32
    eye = jnp.eye(PACK, dtype=f32)
    w1_pack = jnp.kron(eye, jnp.asarray(w1, f32).T)            # (128, PACK*H)
    w2_pack = jnp.kron(eye, jnp.asarray(w2, f32).T)            # (PACK*H, PACK)
    b1_pack = jnp.tile(jnp.asarray(b1, f32), PACK).reshape(1, PACK * H)
    b2_s = jnp.asarray(b2, f32).reshape(1)                      # SMEM scalar
    w1_pack = w1_pack.astype(x_packed.dtype)                    # bf16 or f32

    # --- tiling: TR packed rows per grid step (TR * PACK batch rows) -------
    tr_target = max(8, ((int(tm) // PACK) // 8) * 8)            # sublane multiple
    # keep >= 2 grid steps when the batch allows it (v7x dual-TC sharding,
    # keeps the DMA pipeline full); otherwise a single clamped block.
    tr = min(tr_target, max(8, _round_up(pl.cdiv(Bp, 2), 8)))
    num_tiles = pl.cdiv(Bp, tr)

    itemsize = jnp.dtype(x_packed.dtype).itemsize
    cost = pl.CostEstimate(
        flops=2 * Bp * 128 * (PACK * H) + 2 * Bp * (PACK * H) * PACK,
        transcendentals=Bp * PACK,
        bytes_accessed=Bp * 128 * itemsize + Bp * PACK * 4,
    )

    out = pl.pallas_call(
        _mlp_kernel,
        out_shape=jax.ShapeDtypeStruct((Bp, PACK), jnp.float32),
        grid=(num_tiles,),
        in_specs=[
            pl.BlockSpec((tr, 128), lambda i: (i, 0)),            # x tile (lane-dense)
            pl.BlockSpec((128, PACK * H), lambda i: (0, 0)),      # w1_pack resident
            pl.BlockSpec((1, PACK * H), lambda i: (0, 0)),        # b1_pack resident
            pl.BlockSpec((PACK * H, PACK), lambda i: (0, 0)),     # w2_pack resident
            pl.BlockSpec(memory_space=pltpu.MemorySpace.SMEM),    # b2 scalar
        ],
        out_specs=pl.BlockSpec((tr, PACK), lambda i: (i, 0)),
        compiler_params=pltpu.CompilerParams(
            dimension_semantics=("parallel",),                    # megacore / v7x 2-TC
        ),
        cost_estimate=cost,
    )(x_packed, w1_pack, b1_pack, w2_pack, b2_s)

    # Layout plumbing back to the PyTorch (B, 1) shape (free reshape + slice).
    return out.reshape(-1)[:B].reshape(B, 1)


# ----------------------------------------------------------------------------
# Demo / self-check
# ----------------------------------------------------------------------------
if __name__ == "__main__":
    key = jax.random.PRNGKey(0)
    k_x, k_w1, k_b1, k_w2, k_b2 = jax.random.split(key, 5)

    # Synthetic deterministic setup: D = len(packets_memory[0]) - 1 := 16
    B, D, H = 300, 16, 2
    # Input arrives with trailing structure (4, 4) and is flattened, as in the module.
    x = jax.random.normal(k_x, (B, 4, 4), dtype=jnp.float32)

    # PyTorch-layout Linear parameters, deterministic init.
    w1 = 0.1 * jax.random.normal(k_w1, (H, D), dtype=jnp.float32)   # Linear(D, 2).weight
    b1 = 0.1 * jax.random.normal(k_b1, (H,), dtype=jnp.float32)     # Linear(D, 2).bias
    w2 = 0.1 * jax.random.normal(k_w2, (1, H), dtype=jnp.float32)   # Linear(2, 1).weight
    b2 = 0.1 * jax.random.normal(k_b2, (1,), dtype=jnp.float32)     # Linear(2, 1).bias

    # Small tile so the demo batch exercises a multi-step "parallel" grid with a
    # partial last block (production default is tm=16384).
    out = neural_network_forward(x, w1, b1, w2, b2, tm=128)
    out = jax.block_until_ready(out)
    assert out.shape == (B, 1)

    # Reference check in plain JAX (same math).
    x2d = x.reshape(B, -1)
    ref = MAX_POSSIBLE_DIST * jax.nn.sigmoid(
        jnp.maximum(x2d @ w1.T + b1, 0.0) @ w2.T + b2
    )
    # approx=True reciprocal -> slightly looser tolerance than exact-rcp check.
    np.testing.assert_allclose(np.asarray(out), np.asarray(ref), rtol=2e-3, atol=2e-4)

    print("KERNEL_OK")
</pallas_src>

<mosaic_0001>
module attributes {stable_mosaic.version = 11 : i64} {
  func.func @_mlp_kernel(%arg0: i32, %arg1: memref<16x128xf32, #tpu.memory_space<vmem>>, %arg2: memref<128x16xf32, #tpu.memory_space<vmem>>, %arg3: memref<1x16xf32, #tpu.memory_space<vmem>>, %arg4: memref<16x8xf32, #tpu.memory_space<vmem>>, %arg5: memref<1xf32, #tpu.memory_space<smem>>, %arg6: memref<16x8xf32, #tpu.memory_space<vmem>>) attributes {dimension_semantics = [#tpu.dimension_semantics<parallel>], iteration_bounds = array<i64: 3>, scalar_prefetch = 0 : i64, scratch_operands = 0 : i64, tpu.core_type = #tpu.core_type<tc>, window_params = [{transform_indices = @transform_0, window_bounds = array<i64: 16, 128>}, {pipeline_mode = #tpu.pipeline_mode<synchronous>, transform_indices = @transform_1, window_bounds = array<i64: 128, 16>}, {pipeline_mode = #tpu.pipeline_mode<synchronous>, transform_indices = @transform_2, window_bounds = array<i64: 1, 16>}, {pipeline_mode = #tpu.pipeline_mode<synchronous>, transform_indices = @transform_3, window_bounds = array<i64: 16, 8>}, {transform_indices = @transform_4, window_bounds = array<i64: 1>}, {transform_indices = @transform_5, window_bounds = array<i64: 16, 8>}]} {
    %c0 = arith.constant 0 : index
    %c0_0 = arith.constant 0 : index
    %0 = vector.load %arg1[%c0, %c0_0] : memref<16x128xf32, #tpu.memory_space<vmem>>, vector<16x128xf32>
    %c0_1 = arith.constant 0 : index
    %c0_2 = arith.constant 0 : index
    %1 = vector.load %arg2[%c0_1, %c0_2] : memref<128x16xf32, #tpu.memory_space<vmem>>, vector<128x16xf32>
    %cst = arith.constant dense<0.000000e+00> : vector<16x16xf32>
    %2 = tpu.matmul %0, %1, %cst {dimension_numbers = #tpu.dot_dimension_numbers<[1], [0], [0], [1], [0, 0, 1, 1], [], []>} : vector<16x128xf32>, vector<128x16xf32>, vector<16x16xf32> -> vector<16x16xf32>
    %c0_3 = arith.constant 0 : index
    %c0_4 = arith.constant 0 : index
    %3 = vector.load %arg3[%c0_3, %c0_4] : memref<1x16xf32, #tpu.memory_space<vmem>>, vector<1x16xf32>
    %4 = vector.broadcast %3 : vector<1x16xf32> to vector<16x16xf32>
    %5 = arith.addf %2, %4 : vector<16x16xf32>
    %cst_5 = arith.constant 0.000000e+00 : f32
    %6 = vector.broadcast %cst_5 : f32 to vector<16x16xf32>
    %7 = arith.maximumf %5, %6 : vector<16x16xf32>
    %c0_6 = arith.constant 0 : index
    %c0_7 = arith.constant 0 : index
    %8 = vector.load %arg4[%c0_6, %c0_7] : memref<16x8xf32, #tpu.memory_space<vmem>>, vector<16x8xf32>
    %cst_8 = arith.constant dense<0.000000e+00> : vector<16x8xf32>
    %9 = tpu.matmul %7, %8, %cst_8 {dimension_numbers = #tpu.dot_dimension_numbers<[1], [0], [0], [1], [0, 0, 1, 1], [], []>} : vector<16x16xf32>, vector<16x8xf32>, vector<16x8xf32> -> vector<16x8xf32>
    %c0_9 = arith.constant 0 : index
    %10 = memref.load %arg5[%c0_9] : memref<1xf32, #tpu.memory_space<smem>>
    %11 = vector.broadcast %10 : f32 to vector<16x8xf32>
    %12 = arith.addf %9, %11 : vector<16x8xf32>
    %cst_10 = arith.constant 0.000000e+00 : f32
    %13 = vector.broadcast %cst_10 : f32 to vector<16x8xf32>
    %14 = arith.subf %13, %12 : vector<16x8xf32>
    %15 = math.exp %14 : vector<16x8xf32>
    %cst_11 = arith.constant 1.000000e+00 : f32
    %16 = vector.broadcast %cst_11 : f32 to vector<16x8xf32>
    %17 = arith.addf %16, %15 : vector<16x8xf32>
    %18 = tpu.reciprocal %17 {approx = true} : vector<16x8xf32> -> vector<16x8xf32>
    %cst_12 = arith.constant 0.101853557 : f32
    %19 = vector.broadcast %cst_12 : f32 to vector<16x8xf32>
    %20 = arith.mulf %19, %18 : vector<16x8xf32>
    %c0_13 = arith.constant 0 : index
    %c0_14 = arith.constant 0 : index
    %21 = vector.load %arg6[%c0_13, %c0_14] : memref<16x8xf32, #tpu.memory_space<vmem>>, vector<16x8xf32>
    tpu.vector_store %arg6[%c0_13, %c0_14], %20 {strides = array<i32>} : memref<16x8xf32, #tpu.memory_space<vmem>>, vector<16x8xf32>,
    return
  }
  func.func @transform_0(%arg0: i32) -> (i32, i32) {
    %c0_i32 = arith.constant 0 : i32
    %c0_i32_0 = arith.constant 0 : i32
    return %arg0, %c0_i32 : i32, i32
  }
  func.func @transform_1(%arg0: i32) -> (i32, i32) {
    %c0_i32 = arith.constant 0 : i32
    %c0_i32_0 = arith.constant 0 : i32
    %c0_i32_1 = arith.constant 0 : i32
    return %c0_i32, %c0_i32_0 : i32, i32
  }
  func.func @transform_2(%arg0: i32) -> (i32, i32) {
    %c0_i32 = arith.constant 0 : i32
    %c0_i32_0 = arith.constant 0 : i32
    %c0_i32_1 = arith.constant 0 : i32
    return %c0_i32, %c0_i32_0 : i32, i32
  }
  func.func @transform_3(%arg0: i32) -> (i32, i32) {
    %c0_i32 = arith.constant 0 : i32
    %c0_i32_0 = arith.constant 0 : i32
    %c0_i32_1 = arith.constant 0 : i32
    return %c0_i32, %c0_i32_0 : i32, i32
  }
  func.func @transform_4(%arg0: i32) -> i32 {
    %c0_i32 = arith.constant 0 : i32
    %c0_i32_0 = arith.constant 0 : i32
    return %c0_i32 : i32
  }
  func.func @transform_5(%arg0: i32) -> (i32, i32) {
    %c0_i32 = arith.constant 0 : i32
    %c0_i32_0 = arith.constant 0 : i32
    return %arg0, %c0_i32 : i32, i32
  }
}

</mosaic_0001>

<llo_original>
// kernel: tpu_custom_call.1
$region0: #{tpu_custom_call.1}
  #allocation0 [shape = 'u32[]', space=smem, size = 0x4, offset = 0x4, fixed_abs, tag = 'smem constant byte address 0x4 - core index']
  #allocation1 [shape = 'u32[144,128]{1,0:T(1,128)}', space=vmem, size = 0x12000, scoped, tag = 'internal scratch']
  #allocation2 [shape = 'f32[1]{0:T(128)S(6)}', space=smem, size = 0x200, scoped, tag = 'scoped memory for tpu_custom_call.1']
  %s0 = inlined_call_operand.vmem [shape: f32[38,128], index: 0, kind: input, shape index: {}]
  %s1 = inlined_call_operand.vmem [shape: f32[128,16], index: 1, kind: input, shape index: {}]
  %s2 = inlined_call_operand.vmem [shape: f32[1,16], index: 2, kind: input, shape index: {}]
  %s3 = inlined_call_operand.vmem [shape: f32[16,8], index: 3, kind: input, shape index: {}]
  %s4 = inlined_call_operand.<no memory space> [shape: f32[1], index: 4, kind: input, shape index: {}]
  %s5 = inlined_call_operand.vmem [shape: f32[38,8], index: 5, kind: output, shape index: {}]
  %s6 = sld [smem:[#allocation0]]
  $region101: #{tpu_custom_call.1} parent=0
    _
  %s8 = ssub.s32 1, %s6
  %s9 = scalar_select 0, %s8, %s6
  %10 = sst [smem:[#allocation2]] %s4
  $region1: #{tpu_custom_call.1} parent=0
    #allocation3 [shape = 'u8[16384]{0}', space=vmem, size = 0x4000, scoped, tag = 'output window, operand 0']
    loop: start=0, step=1, limit=5
    $region2: #{tpu_custom_call.1} parent=1 // loop_pre_header
      _
    $region3: #{tpu_custom_call.1} parent=1 // loop_header
      %s12 = sphi 0, %s16
      %p13 = scmp.ge.s32.totalorder %s12, 5
      %s22 = sphi 0, %s24
      %s25 = sphi 0, %s22
      %s26 = sphi 0, %s25
      %s42 = sphi 0, %s26
      %s46 = sphi 0, %s46
      %s48 = sphi 0, %s46
      %s49 = sphi 0, %s48
      %s63 = sphi 0, %s49
      %s67 = sphi 0, %s67
      %s69 = sphi 0, %s67
      %s70 = sphi 0, %s69
      %s84 = sphi 0, %s70
      %s88 = sphi 0, %s88
      %s90 = sphi 0, %s88
      %s91 = sphi 0, %s90
      %s105 = sphi 0, %s91
      %s109 = sphi 0, %s109
      %s111 = sphi 0, %s109
      %s112 = sphi 0, %s111
      %s126 = sphi 0, %s112
      %s132 = sphi 0, %s134
      %s135 = sphi 0, %s132
      %s136 = sphi 0, %s135
      %s152 = sphi 0, %s136
    $region4: #{tpu_custom_call.1} parent=1 // loop_header_branch
      %15 = sbr.rel (%p13) target = $region8
    $region5: #{tpu_custom_call.1} parent=1 // loop_body
      %s17 = ssub.s32 %s12, 1
      %s18 = ssub.s32 %s12, 2
      %s19 = sadd.s32 %s12, 1
      %s20 = ssub.s32 %s12, %s19
      %p21 = scmp.eq.s32.totalorder %s20, 0
      %s23 = sadd.s32 %s22, 1
      %s24 = scalar_select %p21, %s22, %s23
      %p27 = pneg %p21
      %p28 = scmp.eq.s32.totalorder %s12, 2
      %p29 = por %p27, %p28
      %p30 = scmp.ne.s32.totalorder %s22, %s25
      %p31 = scmp.eq.s32.totalorder %s12, 0
      %p32 = por %p30, %p31
      %p33 = scmp.ne.s32.totalorder %s22, %s25
      %p34 = scmp.eq.s32.totalorder %s17, 2
      %p35 = por %p33, %p34
      %p36 = scmp.ne.s32.totalorder %s25, %s26
      %p37 = scmp.eq.s32.totalorder %s17, 0
      %p38 = por %p36, %p37
      %p39 = scmp.ne.s32.totalorder %s25, %s26
      %p40 = scmp.eq.s32.totalorder %s18, 2
      %p41 = por %p39, %p40
      %p43 = scmp.ne.s32.totalorder %s26, %s42
      %p44 = scmp.eq.s32.totalorder %s18, 0
      %p45 = por %p43, %p44
      %s47 = sadd.s32 %s46, 1
      %p50 = scmp.eq.s32.totalorder %s12, 2
      %p51 = scmp.ne.s32.totalorder %s46, %s48
      %p52 = scmp.eq.s32.totalorder %s12, 0
      %p53 = por %p51, %p52
      %p54 = scmp.ne.s32.totalorder %s46, %s48
      %p55 = scmp.eq.s32.totalorder %s17, 2
      %p56 = por %p54, %p55
      %p57 = scmp.ne.s32.totalorder %s48, %s49
      %p58 = scmp.eq.s32.totalorder %s17, 0
      %p59 = por %p57, %p58
      %p60 = scmp.ne.s32.totalorder %s48, %s49
      %p61 = scmp.eq.s32.totalorder %s18, 2
      %p62 = por %p60, %p61
      %p64 = scmp.ne.s32.totalorder %s49, %s63
      %p65 = scmp.eq.s32.totalorder %s18, 0
      %p66 = por %p64, %p65
      %s68 = sadd.s32 %s67, 1
      %p71 = scmp.eq.s32.totalorder %s12, 2
      %p72 = scmp.ne.s32.totalorder %s67, %s69
      %p73 = scmp.eq.s32.totalorder %s12, 0
      %p74 = por %p72, %p73
      %p75 = scmp.ne.s32.totalorder %s67, %s69
      %p76 = scmp.eq.s32.totalorder %s17, 2
      %p77 = por %p75, %p76
      %p78 = scmp.ne.s32.totalorder %s69, %s70
      %p79 = scmp.eq.s32.totalorder %s17, 0
      %p80 = por %p78, %p79
      %p81 = scmp.ne.s32.totalorder %s69, %s70
      %p82 = scmp.eq.s32.totalorder %s18, 2
      %p83 = por %p81, %p82
      %p85 = scmp.ne.s32.totalorder %s70, %s84
      %p86 = scmp.eq.s32.totalorder %s18, 0
      %p87 = por %p85, %p86
      %s89 = sadd.s32 %s88, 1
      %p92 = scmp.eq.s32.totalorder %s12, 2
      %p93 = scmp.ne.s32.totalorder %s88, %s90
      %p94 = scmp.eq.s32.totalorder %s12, 0
      %p95 = por %p93, %p94
      %p96 = scmp.ne.s32.totalorder %s88, %s90
      %p97 = scmp.eq.s32.totalorder %s17, 2
      %p98 = por %p96, %p97
      %p99 = scmp.ne.s32.totalorder %s90, %s91
      %p100 = scmp.eq.s32.totalorder %s17, 0
      %p101 = por %p99, %p100
      %p102 = scmp.ne.s32.totalorder %s90, %s91
      %p103 = scmp.eq.s32.totalorder %s18, 2
      %p104 = por %p102, %p103
      %p106 = scmp.ne.s32.totalorder %s91, %s105
      %p107 = scmp.eq.s32.totalorder %s18, 0
      %p108 = por %p106, %p107
      %s110 = sadd.s32 %s109, 1
      %p113 = scmp.eq.s32.totalorder %s12, 2
      %p114 = scmp.ne.s32.totalorder %s109, %s111
      %p115 = scmp.eq.s32.totalorder %s12, 0
      %p116 = por %p114, %p115
      %p117 = scmp.ne.s32.totalorder %s109, %s111
      %p118 = scmp.eq.s32.totalorder %s17, 2
      %p119 = por %p117, %p118
      %p120 = scmp.ne.s32.totalorder %s111, %s112
      %p121 = scmp.eq.s32.totalorder %s17, 0
      %p122 = por %p120, %p121
      %p123 = scmp.ne.s32.totalorder %s111, %s112
      %p124 = scmp.eq.s32.totalorder %s18, 2
      %p125 = por %p123, %p124
      %p127 = scmp.ne.s32.totalorder %s112, %s126
      %p128 = scmp.eq.s32.totalorder %s18, 0
      %p129 = por %p127, %p128
      %s130 = ssub.s32 %s12, %s19
      %p131 = scmp.eq.s32.totalorder %s130, 0
      %s133 = sadd.s32 %s132, 1
      %s134 = scalar_select %p131, %s132, %s133
      %p137 = pneg %p131
      %p138 = scmp.eq.s32.totalorder %s12, 2
      %p139 = por %p137, %p138
      %p140 = scmp.ne.s32.totalorder %s132, %s135
      %p141 = scmp.eq.s32.totalorder %s12, 0
      %p142 = por %p140, %p141
      %p143 = scmp.ne.s32.totalorder %s132, %s135
      %p144 = scmp.eq.s32.totalorder %s17, 2
      %p145 = por %p143, %p144
      %p146 = scmp.ne.s32.totalorder %s135, %s136
      %p147 = scmp.eq.s32.totalorder %s17, 0
      %p148 = por %p146, %p147
      %p149 = scmp.ne.s32.totalorder %s135, %s136
      %p150 = scmp.eq.s32.totalorder %s18, 2
      %p151 = por %p149, %p150
      %p153 = scmp.ne.s32.totalorder %s136, %s152
      %p154 = scmp.eq.s32.totalorder %s18, 0
      %p155 = por %p153, %p154
      %p156 = scmp.le.s32.totalorder 1, %s12
      %p157 = scmp.lt.s32.totalorder %s12, 4
      %p158 = pnand %p156, %p157
      %p159 = pneg %p158
      // Predicated region
      $region9: #{tpu_custom_call.1} parent=5 // pred_check
        _
      $region10: #{tpu_custom_call.1} parent=5 // pred_check_branch
        %161 = sbr.rel (%p158) target = $region12
      $region11: #{tpu_custom_call.1} parent=5 // pred_region
        %s162 = ssub.s32 %s12, 1
        // Predicated region
        $region13: #{tpu_custom_call.1} parent=11 // pred_check
          %p163 = pneg %p59
        $region14: #{tpu_custom_call.1} parent=11 // pred_check_branch
          %165 = sbr.rel (%p163) target = $region16
        $region15: #{tpu_custom_call.1} parent=11 // pred_region
          _
        $region16: #{tpu_custom_call.1} parent=11 // pred_fallthru
          _
        // Predicated region
        $region17: #{tpu_custom_call.1} parent=11 // pred_check
          %p166 = pneg %p80
        $region18: #{tpu_custom_call.1} parent=11 // pred_check_branch
          %168 = sbr.rel (%p166) target = $region20
        $region19: #{tpu_custom_call.1} parent=11 // pred_region
          _
        $region20: #{tpu_custom_call.1} parent=11 // pred_fallthru
          _
        // Predicated region
        $region21: #{tpu_custom_call.1} parent=11 // pred_check
          %p169 = pneg %p101
        $region22: #{tpu_custom_call.1} parent=11 // pred_check_branch
          %171 = sbr.rel (%p169) target = $region24
        $region23: #{tpu_custom_call.1} parent=11 // pred_region
          _
        $region24: #{tpu_custom_call.1} parent=11 // pred_fallthru
          _
        // Predicated region
        $region25: #{tpu_custom_call.1} parent=11 // pred_check
          %p172 = pneg %p122
        $region26: #{tpu_custom_call.1} parent=11 // pred_check_branch
          %174 = sbr.rel (%p172) target = $region28
        $region27: #{tpu_custom_call.1} parent=11 // pred_region
          _
        $region28: #{tpu_custom_call.1} parent=11 // pred_fallthru
          _
      $region12: #{tpu_custom_call.1} parent=5 // pred_fallthru
        _
      %p175 = scmp.lt.s32.totalorder %s12, 3
      // Predicated region
      $region29: #{tpu_custom_call.1} parent=5 // pred_check
        %p176 = pneg %p175
      $region30: #{tpu_custom_call.1} parent=5 // pred_check_branch
        %178 = sbr.rel (%p176) target = $region32
      $region31: #{tpu_custom_call.1} parent=5 // pred_region
        // Predicated region
        $region33: #{tpu_custom_call.1} parent=31 // pred_check
          %p179 = pneg %p32
        $region34: #{tpu_custom_call.1} parent=31 // pred_check_branch
          %181 = sbr.rel (%p179) target = $region36
        $region35: #{tpu_custom_call.1} parent=31 // pred_region
          %s182 = smul.u32 2, %s12
          %s183 = ssub.s32 5, %s182
          %p184 = scmp.lt.s32.totalorder %s183, 2
          %s185 = scalar_select %p184, %s183, 2
          %s186 = smul.u32 128, %s185
          %p187 = scmp.lt.s32.totalorder %s182, 4
          %s188 = scalar_select %p187, %s182, 4
          %s189 = smul.addr %s188, 8
          %s190 = scalar_lea.vmem %s0, %s189
          %s191 = smul.u32 2, %s12
          %s192 = ssub.s32 5, %s191
          %p193 = scmp.lt.s32.totalorder %s192, 2
          %s194 = scalar_select %p193, %s192, 2
          %s195 = smul.u32 128, %s194
        $region36: #{tpu_custom_call.1} parent=31 // pred_fallthru
          _
      $region32: #{tpu_custom_call.1} parent=5 // pred_fallthru
        _
      %p196 = scmp.le.s32.totalorder 1, %s12
      %p197 = scmp.lt.s32.totalorder %s12, 4
      %p198 = pnand %p196, %p197
      %p199 = pneg %p198
      // Predicated region
      $region37: #{tpu_custom_call.1} parent=5 // pred_check
        _
      $region38: #{tpu_custom_call.1} parent=5 // pred_check_branch
        %201 = sbr.rel (%p198) target = $region40
      $region39: #{tpu_custom_call.1} parent=5 // pred_region
        %s202 = ssub.s32 %s12, 1
        %s203 = smul.u32 2, %s17
        %s204 = ssub.s32 5, %s203
        %p205 = scmp.lt.s32.totalorder %s204, 2
        %s206 = scalar_select %p205, %s204, 2
        %s207 = smul.u32 128, %s206
        %p208 = scmp.lt.s32.totalorder %s203, 4
        %s209 = scalar_select %p208, %s203, 4
        %s210 = smul.addr %s209, 8
        %s211 = scalar_lea.vmem %s0, %s210
        %p212 = pneg %p38
        %p213 = pneg %p35
        %p214 = pneg %p59
        %p215 = pneg %p56
        %p216 = pneg %p80
        %p217 = pneg %p77
        %p218 = pneg %p101
        %p219 = pneg %p98
        %p220 = pneg %p122
        %p221 = pneg %p119
        %p222 = pneg %p148
        %p223 = pneg %p145
        %s224 = sand.u32 %s135, 1
        %s225 = sand.u32 %s135, 1
        %s226 = smul.addr %s225, 16
        %s227 = scalar_lea.vmem [#allocation3], %s226
        %s228 = smul.u32 2, %s17
        %s229 = ssub.s32 5, %s228
        %p230 = scmp.lt.s32.totalorder %s229, 2
        %s231 = scalar_select %p230, %s229, 2
        %s232 = smul.u32 128, %s231
        %p233 = scmp.lt.s32.totalorder %s228, 4
        %s234 = scalar_select %p233, %s228, 4
        %s235 = smul.addr %s234, 8
        %s236 = scalar_lea.vmem %s0, %s235
        %s237 = smul.u32 2, %s17
        %s238 = ssub.s32 5, %s237
        %p239 = scmp.lt.s32.totalorder %s238, 2
        %s240 = scalar_select %p239, %s238, 2
        %s241 = smul.u32 128, %s240
        %s242 = smul.u32 2, %s17
        %s243 = ssub.s32 5, %s242
        %p244 = scmp.lt.s32.totalorder %s243, 2
        %s245 = scalar_select %p244, %s243, 2
        %s246 = smul.u32 128, %s245
        %v247 = vld [vmem:[%s236] sm:$0xff]
        %v248 = vld [vmem:[%s236 + $0x8] sm:$0xff]
        %v249 = vld [vmem:[%s1] sm:$0xff]
        %v250 = vld [vmem:[%s1 + $0x8] sm:$0xff]
        %v251 = vld [vmem:[%s1 + $0x10] sm:$0xff]
        %v252 = vld [vmem:[%s1 + $0x18] sm:$0xff]
        %v253 = vld [vmem:[%s1 + $0x20] sm:$0xff]
        %v254 = vld [vmem:[%s1 + $0x28] sm:$0xff]
        %v255 = vld [vmem:[%s1 + $0x30] sm:$0xff]
        %v256 = vld [vmem:[%s1 + $0x38] sm:$0xff]
        %v257 = vld [vmem:[%s1 + $0x40] sm:$0xff]
        %v258 = vld [vmem:[%s1 + $0x48] sm:$0xff]
        %v259 = vld [vmem:[%s1 + $0x50] sm:$0xff]
        %v260 = vld [vmem:[%s1 + $0x58] sm:$0xff]
        %v261 = vld [vmem:[%s1 + $0x60] sm:$0xff]
        %v262 = vld [vmem:[%s1 + $0x68] sm:$0xff]
        %v263 = vld [vmem:[%s1 + $0x70] sm:$0xff]
        %v264 = vld [vmem:[%s1 + $0x78] sm:$0xff]
        %v265 = vld [vmem:[%s2] sm:$0x1]
        %v267 = vlaneseq
        %v268 = vshrl.u32 %v267, 7
        %v269 = vsub.s32 0, %v268
        %v270 = vrot.slane %v265, %v269
        %272 = vmatprep.subr.mxu0 0.0
        %273 = vmatpush1.msra.mxu0 %v249
        %274 = vmatprep.subr.mxu0 0.0
        %275 = vmatpush1.msra.mxu0 %v250
        %276 = vmatprep.subr.mxu0 0.0
        %277 = vmatpush1.msra.mxu0 %v251
        %278 = vmatprep.subr.mxu0 0.0
        %279 = vmatpush1.msra.mxu0 %v252
        %280 = vmatprep.subr.mxu0 0.0
        %281 = vmatpush1.msra.mxu0 %v253
        %282 = vmatprep.subr.mxu0 0.0
        %283 = vmatpush1.msra.mxu0 %v254
        %284 = vmatprep.subr.mxu0 0.0
        %285 = vmatpush1.msra.mxu0 %v255
        %286 = vmatprep.subr.mxu0 0.0
        %287 = vmatpush1.msra.mxu0 %v256
        %288 = vmatprep.subr.mxu0 0.0
        %289 = vmatpush1.msra.mxu0 %v257
        %290 = vmatprep.subr.mxu0 0.0
        %291 = vmatpush1.msra.mxu0 %v258
        %292 = vmatprep.subr.mxu0 0.0
        %293 = vmatpush1.msra.mxu0 %v259
        %294 = vmatprep.subr.mxu0 0.0
        %295 = vmatpush1.msra.mxu0 %v260
        %296 = vmatprep.subr.mxu0 0.0
        %297 = vmatpush1.msra.mxu0 %v261
        %298 = vmatprep.subr.mxu0 0.0
        %299 = vmatpush1.msra.mxu0 %v262
        %300 = vmatprep.subr.mxu0 0.0
        %301 = vmatpush1.msra.mxu0 %v263
        %302 = vmatprep.subr.mxu0 0.0
        %303 = vmatpush1.msra.mxu0 %v264
        %304 = vmatprep.subr.mxu0 0.0
        %305 = vmatpush1.msra.mxu0 0.0
        %306 = vmatprep.subr.mxu0 0.0
        %307 = vmatpush1.msra.mxu0 0.0
        %308 = vmatprep.subr.mxu0 0.0
        %309 = vmatpush1.msra.mxu0 0.0
        %310 = vmatprep.subr.mxu0 0.0
        %311 = vmatpush1.msra.mxu0 0.0
        %312 = vmatprep.subr.mxu0 0.0
        %313 = vmatpush1.msra.mxu0 0.0
        %314 = vmatprep.subr.mxu0 0.0
        %315 = vmatpush1.msra.mxu0 0.0
        %316 = vmatprep.subr.mxu0 0.0
        %317 = vmatpush1.msra.mxu0 0.0
        %318 = vmatprep.subr.mxu0 0.0
        %319 = vmatpush1.msra.mxu0 0.0
        %320 = vmatprep.subr.mxu0 0.0
        %321 = vmatpush1.msra.mxu0 0.0
        %322 = vmatprep.subr.mxu0 0.0
        %323 = vmatpush1.msra.mxu0 0.0
        %324 = vmatprep.subr.mxu0 0.0
        %325 = vmatpush1.msra.mxu0 0.0
        %326 = vmatprep.subr.mxu0 0.0
        %327 = vmatpush1.msra.mxu0 0.0
        %328 = vmatprep.subr.mxu0 0.0
        %329 = vmatpush1.msra.mxu0 0.0
        %330 = vmatprep.subr.mxu0 0.0
        %331 = vmatpush1.msra.mxu0 0.0
        %332 = vmatprep.subr.mxu0 0.0
        %333 = vmatpush1.msra.mxu0 0.0
        %334 = vmatprep.subr.mxu0 0.0
        %335 = vmatpush1.msra.mxu0 0.0
        %336 = vmatprep.mubr.f32.mxu0 0.0
        %337 = vmatmul.mubr.f32.gmra.mrb[0].mxu0 %v247
        %v338 = vpop.f32.mrb[0].mxu0
        %v339 = vadd.f32 %v270, %v338
        %v340 = vpop.f32.mrb[0].mxu0
        %341 = vmatprep.mubr.f32.mxu0 0.0
        %342 = vmatmul.mubr.f32.gmra.mrb[0].mxu0 %v248
        %v343 = vpop.f32.mrb[0].mxu0
        %v344 = vadd.f32 %v270, %v343
        %v345 = vpop.f32.mrb[0].mxu0
        %346 = vdwg.mxu0
        %v347 = vmax.f32 %v339, 0.0
        %v348 = vmax.f32 %v344, 0.0
        %v349 = vld [vmem:[%s3] sm:$0xff]
        %v350 = vld [vmem:[%s3 + $0x8] sm:$0xff]
        %s351 = sld [smem:[#allocation2]]
        %v352 = vstv %s351
        %vm353 = vcmask 130048
        %v355 = vsel %vm353, %v347, 0
        %v358 = vsel %vm353, %v348, 0
        %360 = vmatprep.subr.mxu0 0.0
        %361 = vmatpush1.msra.mxu0 %v349
        %362 = vmatprep.subr.mxu0 0.0
        %363 = vmatpush1.msra.mxu0 %v350
        %364 = vmatprep.subr.mxu0 0.0
        %365 = vmatpush1.msra.mxu0 0.0
        %366 = vmatprep.subr.mxu0 0.0
        %367 = vmatpush1.msra.mxu0 0.0
        %368 = vmatprep.subr.mxu0 0.0
        %369 = vmatpush1.msra.mxu0 0.0
        %370 = vmatprep.subr.mxu0 0.0
        %371 = vmatpush1.msra.mxu0 0.0
        %372 = vmatprep.subr.mxu0 0.0
        %373 = vmatpush1.msra.mxu0 0.0
        %374 = vmatprep.subr.mxu0 0.0
        %375 = vmatpush1.msra.mxu0 0.0
        %376 = vmatprep.subr.mxu0 0.0
        %377 = vmatpush1.msra.mxu0 0.0
        %378 = vmatprep.subr.mxu0 0.0
        %379 = vmatpush1.msra.mxu0 0.0
        %380 = vmatprep.subr.mxu0 0.0
        %381 = vmatpush1.msra.mxu0 0.0
        %382 = vmatprep.subr.mxu0 0.0
        %383 = vmatpush1.msra.mxu0 0.0
        %384 = vmatprep.subr.mxu0 0.0
        %385 = vmatpush1.msra.mxu0 0.0
        %386 = vmatprep.subr.mxu0 0.0
        %387 = vmatpush1.msra.mxu0 0.0
        %388 = vmatprep.subr.mxu0 0.0
        %389 = vmatpush1.msra.mxu0 0.0
        %390 = vmatprep.subr.mxu0 0.0
        %391 = vmatpush1.msra.mxu0 0.0
        %392 = vmatprep.subr.mxu0 0.0
        %393 = vmatpush1.msra.mxu0 0.0
        %394 = vmatprep.subr.mxu0 0.0
        %395 = vmatpush1.msra.mxu0 0.0
        %396 = vmatprep.subr.mxu0 0.0
        %397 = vmatpush1.msra.mxu0 0.0
        %398 = vmatprep.subr.mxu0 0.0
        %399 = vmatpush1.msra.mxu0 0.0
        %400 = vmatprep.subr.mxu0 0.0
        %401 = vmatpush1.msra.mxu0 0.0
        %402 = vmatprep.subr.mxu0 0.0
        %403 = vmatpush1.msra.mxu0 0.0
        %404 = vmatprep.subr.mxu0 0.0
        %405 = vmatpush1.msra.mxu0 0.0
        %406 = vmatprep.subr.mxu0 0.0
        %407 = vmatpush1.msra.mxu0 0.0
        %408 = vmatprep.subr.mxu0 0.0
        %409 = vmatpush1.msra.mxu0 0.0
        %410 = vmatprep.subr.mxu0 0.0
        %411 = vmatpush1.msra.mxu0 0.0
        %412 = vmatprep.subr.mxu0 0.0
        %413 = vmatpush1.msra.mxu0 0.0
        %414 = vmatprep.subr.mxu0 0.0
        %415 = vmatpush1.msra.mxu0 0.0
        %416 = vmatprep.subr.mxu0 0.0
        %417 = vmatpush1.msra.mxu0 0.0
        %418 = vmatprep.subr.mxu0 0.0
        %419 = vmatpush1.msra.mxu0 0.0
        %420 = vmatprep.subr.mxu0 0.0
        %421 = vmatpush1.msra.mxu0 0.0
        %422 = vmatprep.subr.mxu0 0.0
        %423 = vmatpush1.msra.mxu0 0.0
        %424 = vmatprep.mubr.f32.mxu0 0.0
        %425 = vmatmul.mubr.f32.gmra.mrb[0].mxu0 %v355
        %v426 = vpop.f32.mrb[0].mxu0
        %v427 = vadd.f32 %v352, %v426
        %v428 = vpop.f32.mrb[0].mxu0
        %429 = vmatprep.mubr.f32.mxu0 0.0
        %430 = vmatmul.mubr.f32.gmra.mrb[0].mxu0 %v358
        %v431 = vpop.f32.mrb[0].mxu0
        %v432 = vadd.f32 %v352, %v431
        %v433 = vpop.f32.mrb[0].mxu0
        %434 = vdwg.mxu0
        %v435 = vsub.f32 0.0, %v427
        %v436 = vsub.f32 0.0, %v432
        %v437 = vmul.f32 %v435, 1.442695
        %v438 = vpow.pop %v437
        %v439 = vmul.f32 %v436, 1.442695
        %v440 = vpow.pop %v439
        %v441 = vadd.f32 %v438, 1.0
        %v442 = vadd.f32 %v440, 1.0
        %v443 = vrcp.pop %v441
        %v444 = vrcp.pop %v442
        %v445 = vmul.f32 %v443, 0.10185356
        %v446 = vmul.f32 %v444, 0.10185356
        %vm447 = vcmask 64512
        %448 = vst.msk [vmem:[%s227] sm:$0xff] %vm447, %v445
        %449 = vst.msk [vmem:[%s227 + $0x8] sm:$0xff] %vm447, %v446
        %s450 = sand.u32 %s135, 1
        %s451 = sand.u32 %s135, 1
        %s452 = smul.addr %s451, 16
        %s453 = scalar_lea.vmem [#allocation3], %s452
        // Predicated region
        $region41: #{tpu_custom_call.1} parent=39 // pred_check
          %p454 = pneg %p145
        $region42: #{tpu_custom_call.1} parent=39 // pred_check_branch
          %456 = sbr.rel (%p454) target = $region44
        $region43: #{tpu_custom_call.1} parent=39 // pred_region
          %s457 = smul.u32 2, %s17
          %s458 = ssub.s32 5, %s457
          %p459 = scmp.lt.s32.totalorder %s458, 2
          %s460 = scalar_select %p459, %s458, 2
          %s461 = smul.u32 128, %s460
          %p462 = scmp.ne.s32.totalorder 0, %s461
          %s463 = smul.addr %s457, 8
          %s464 = scalar_lea.vmem %s5, %s463
          // Predicated region
          $region45: #{tpu_custom_call.1} parent=43 // pred_check
            %p465 = pneg %p462
          $region46: #{tpu_custom_call.1} parent=43 // pred_check_branch
            %467 = sbr.rel (%p465) target = $region48
          $region47: #{tpu_custom_call.1} parent=43 // pred_region
            // Predicated region
            $region49: #{tpu_custom_call.1} parent=47 // pred_check
              _
            $region50: #{tpu_custom_call.1} parent=47 // pred_check_branch
              %469 = sbr.rel (0) target = $region52
            $region51: #{tpu_custom_call.1} parent=47 // pred_region
              // Predicated region
              $region71: #{tpu_custom_call.1} parent=51 // pred_check
                _
              $region72: #{tpu_custom_call.1} parent=51 // pred_check_branch
                %520 = sbr.rel (0) target = $region74
              $region73: #{tpu_custom_call.1} parent=51 // pred_region
                %s521 = sshrl.u32 %s460, 1
                // While loop
                $region75: #{tpu_custom_call.1} parent=73 // loop_pre_header
                  _
                $region76: #{tpu_custom_call.1} parent=73 // loop_header
                  %s523 = sphi 0, %s525
                  %p524 = scmp.ge.s32.totalorder %s523, %s521
                  %s528 = sphi 0, %s537
                  %s529 = sphi %s453, %s540
                  %s530 = sphi %s464, %s541
                $region77: #{tpu_custom_call.1} parent=73 // loop_header_branch
                  %527 = sbr.rel (%p524) target = $region81
                $region78: #{tpu_custom_call.1} parent=73 // loop_body
                  %v531 = vld [vmem:[%s529] sm:$0xff]
                  %532 = vst [vmem:[%s530] sm:$0xff] %v531
                  %v533 = vld [vmem:[%s529 + $0x8] sm:$0xff]
                  %534 = vst [vmem:[%s530 + $0x8] sm:$0xff] %v533
                  %s535 = sadd.s32 1, %s528
                  %p536 = scmp.ge.s32.totalorder %s535, %s521
                  %s537 = scalar_select %p536, 0, %s535
                  %s538 = smul.u32 %s537, 16
                  %s539 = smul.u32 %s537, 16
                  %s540 = scalar_lea.vmem %s453, %s538 [#allocation3]
                  %s541 = scalar_lea.vmem %s464, %s539
                $region79: #{tpu_custom_call.1} parent=73 // loop_footer
                  %s525 = sadd.s32 %s523, 1
                $region80: #{tpu_custom_call.1} parent=73 // loop_footer_branch
                  %522 = sbr.rel target = $region76
                $region81: #{tpu_custom_call.1} parent=73 // loop_exit
                  _
                %s542 = sshrl.u32 %s460, 1
                %s543 = sand.u32 %s460, 1
                %s544 = smul.u32 %s542, 2
                %s545 = smul.u32 8, %s544
                %s546 = scalar_lea.vmem %s453, %s545 [#allocation3]
                %s547 = smul.u32 8, %s544
                %s548 = scalar_lea.vmem %s464, %s547
                // While loop
                $region82: #{tpu_custom_call.1} parent=73 // loop_pre_header
                  _
                $region83: #{tpu_custom_call.1} parent=73 // loop_header
                  %s550 = sphi 0, %s552
                  %p551 = scmp.ge.s32.totalorder %s550, %s543
                  %s555 = sphi 0, %s562
                  %s556 = sphi %s546, %s565
                  %s557 = sphi %s548, %s566
                $region84: #{tpu_custom_call.1} parent=73 // loop_header_branch
                  %554 = sbr.rel (%p551) target = $region88
                $region85: #{tpu_custom_call.1} parent=73 // loop_body
                  %v558 = vld [vmem:[%s556] sm:$0xff]
                  %559 = vst [vmem:[%s557] sm:$0xff] %v558
                  %s560 = sadd.s32 1, %s555
                  %p561 = scmp.ge.s32.totalorder %s560, %s543
                  %s562 = scalar_select %p561, 0, %s560
                  %s563 = smul.u32 %s562, 8
                  %s564 = smul.u32 %s562, 8
                  %s565 = scalar_lea.vmem %s546, %s563 [#allocation3]
                  %s566 = scalar_lea.vmem %s548, %s564
                $region86: #{tpu_custom_call.1} parent=73 // loop_footer
                  %s552 = sadd.s32 %s550, 1
                $region87: #{tpu_custom_call.1} parent=73 // loop_footer_branch
                  %549 = sbr.rel target = $region83
                $region88: #{tpu_custom_call.1} parent=73 // loop_exit
                  _
              $region74: #{tpu_custom_call.1} parent=51 // pred_fallthru
                _
              // Predicated region
              $region89: #{tpu_custom_call.1} parent=51 // pred_check
                _
              $region90: #{tpu_custom_call.1} parent=51 // pred_check_branch
                %568 = sbr.rel target = $region92
              $region91: #{tpu_custom_call.1} parent=51 // pred_region
                _
              $region92: #{tpu_custom_call.1} parent=51 // pred_fallthru
                _
            $region52: #{tpu_custom_call.1} parent=47 // pred_fallthru
              _
            // Predicated region
            $region53: #{tpu_custom_call.1} parent=47 // pred_check
              _
            $region54: #{tpu_custom_call.1} parent=47 // pred_check_branch
              %471 = sbr.rel target = $region56
            $region55: #{tpu_custom_call.1} parent=47 // pred_region
              %s473 = sshrl.u32 %s460, 1
              // While loop
              $region57: #{tpu_custom_call.1} parent=55 // loop_pre_header
                _
              $region58: #{tpu_custom_call.1} parent=55 // loop_header
                %s475 = sphi 0, %s477
                %p476 = scmp.ge.s32.totalorder %s475, %s473
                %s480 = sphi 0, %s489
                %s481 = sphi %s453, %s492
                %s482 = sphi %s464, %s493
              $region59: #{tpu_custom_call.1} parent=55 // loop_header_branch
                %479 = sbr.rel (%p476) target = $region63
              $region60: #{tpu_custom_call.1} parent=55 // loop_body
                %v483 = vld [vmem:[%s481] sm:$0xff]
                %484 = vst [vmem:[%s482] sm:$0xff] %v483
                %v485 = vld [vmem:[%s481 + $0x8] sm:$0xff]
                %486 = vst [vmem:[%s482 + $0x8] sm:$0xff] %v485
                %s487 = sadd.s32 1, %s480
                %p488 = scmp.ge.s32.totalorder %s487, %s473
                %s489 = scalar_select %p488, 0, %s487
                %s490 = smul.u32 %s489, 16
                %s491 = smul.u32 %s489, 16
                %s492 = scalar_lea.vmem %s453, %s490 [#allocation3]
                %s493 = scalar_lea.vmem %s464, %s491
              $region61: #{tpu_custom_call.1} parent=55 // loop_footer
                %s477 = sadd.s32 %s475, 1
              $region62: #{tpu_custom_call.1} parent=55 // loop_footer_branch
                %474 = sbr.rel target = $region58
              $region63: #{tpu_custom_call.1} parent=55 // loop_exit
                _
              %s494 = sshrl.u32 %s460, 1
              %s495 = sand.u32 %s460, 1
              %s496 = smul.u32 %s494, 2
              %s497 = smul.u32 8, %s496
              %s498 = scalar_lea.vmem %s453, %s497 [#allocation3]
              %s499 = smul.u32 8, %s496
              %s500 = scalar_lea.vmem %s464, %s499
              // While loop
              $region64: #{tpu_custom_call.1} parent=55 // loop_pre_header
                _
              $region65: #{tpu_custom_call.1} parent=55 // loop_header
                %s502 = sphi 0, %s504
                %p503 = scmp.ge.s32.totalorder %s502, %s495
                %s507 = sphi 0, %s514
                %s508 = sphi %s498, %s517
                %s509 = sphi %s500, %s518
              $region66: #{tpu_custom_call.1} parent=55 // loop_header_branch
                %506 = sbr.rel (%p503) target = $region70
              $region67: #{tpu_custom_call.1} parent=55 // loop_body
                %v510 = vld [vmem:[%s508] sm:$0xff]
                %511 = vst [vmem:[%s509] sm:$0xff] %v510
                %s512 = sadd.s32 1, %s507
                %p513 = scmp.ge.s32.totalorder %s512, %s495
                %s514 = scalar_select %p513, 0, %s512
                %s515 = smul.u32 %s514, 8
                %s516 = smul.u32 %s514, 8
                %s517 = scalar_lea.vmem %s498, %s515 [#allocation3]
                %s518 = scalar_lea.vmem %s500, %s516
              $region68: #{tpu_custom_call.1} parent=55 // loop_footer
                %s504 = sadd.s32 %s502, 1
              $region69: #{tpu_custom_call.1} parent=55 // loop_footer_branch
                %501 = sbr.rel target = $region65
              $region70: #{tpu_custom_call.1} parent=55 // loop_exit
                _
            $region56: #{tpu_custom_call.1} parent=47 // pred_fallthru
              _
          $region48: #{tpu_custom_call.1} parent=43 // pred_fallthru
            _
          %569 = vnop
        $region44: #{tpu_custom_call.1} parent=39 // pred_fallthru
          _
      $region40: #{tpu_custom_call.1} parent=5 // pred_fallthru
        _
      %p570 = scmp.le.s32.totalorder 2, %s12
      // Predicated region
      $region93: #{tpu_custom_call.1} parent=5 // pred_check
        %p571 = pneg %p570
      $region94: #{tpu_custom_call.1} parent=5 // pred_check_branch
        %573 = sbr.rel (%p571) target = $region96
      $region95: #{tpu_custom_call.1} parent=5 // pred_region
        %s574 = ssub.s32 %s12, 2
        // Predicated region
        $region97: #{tpu_custom_call.1} parent=95 // pred_check
          %p575 = pneg %p151
        $region98: #{tpu_custom_call.1} parent=95 // pred_check_branch
          %577 = sbr.rel (%p575) target = $region100
        $region99: #{tpu_custom_call.1} parent=95 // pred_region
          %s578 = sand.u32 %s136, 1
          %s579 = sand.u32 %s136, 1
          %s580 = smul.addr %s579, 16
          %s581 = scalar_lea.vmem [#allocation3], %s580
        $region100: #{tpu_custom_call.1} parent=95 // pred_fallthru
          _
      $region96: #{tpu_custom_call.1} parent=5 // pred_fallthru
        _
    $region6: #{tpu_custom_call.1} parent=1 // loop_footer
      %s16 = sadd.s32 1, %s12
    $region7: #{tpu_custom_call.1} parent=1 // loop_footer_branch
      %11 = sbr.rel target = $region3
    $region8: #{tpu_custom_call.1} parent=1 // loop_exit
      _

</llo_original>
